<compile_context>
chip_gen: v7x
topology: tpu7x:2x2x1
jax: 0.10.0
libtpu: 0.0.40
codegen_flags: <defaults>
</compile_context>

<pallas_src>
import functools

import jax
import jax.numpy as jnp
from jax.experimental import pallas as pl
from jax.experimental.pallas import tpu as pltpu

IN_FEATURES = 3
OUT_FEATURES = 4
GROUP = 32                            # batch rows folded onto lanes: 32 * 4 = 128 output lanes
PACKED_IN = GROUP * IN_FEATURES       # 96
PACKED_OUT = GROUP * OUT_FEATURES     # 128
DEFAULT_BLOCK_ROWS = 2048             # packed rows / grid step = 65536 batch rows (~1.75 MB HBM)
MIN_KERNEL_BATCH = 1024               # below this a fused XLA matmul is strictly faster


def linear_kernel(w_ref, b_ref, x_ref, o_ref):
    """w_ref: (96, 128) = kron(I_32, W^T); b_ref: (1, 128) = tile(bias, 32);
       x_ref: (tile_r, 96) packed activations; o_ref: (tile_r, 128) packed output."""
    o_ref[...] = jnp.dot(x_ref[...], w_ref[...],
                         preferred_element_type=jnp.float32) + b_ref[...]


def testnet_forward(x, weight, bias, *, block_rows=DEFAULT_BLOCK_ROWS):
    """x: (B, 3) f32, weight: (4, 3) f32, bias: (4,) f32 -> (B, 4) f32."""
    B = x.shape[0]
    if B < MIN_KERNEL_BATCH or B % GROUP != 0:
        # TODO(synk): tiny / 32-unaligned batches use the fused XLA path; padding them
        # into the kernel would only add HBM traffic and launch overhead.
        return x @ weight.T + bias

    R = B // GROUP
    tile_r = min(block_rows, R)
    if tile_r < R:
        tile_r = max(8, (tile_r // 8) * 8)    # sub-full tiles must be sublane-aligned

    # Free (row-major preserving) reshape: no data movement under jit.
    x_packed = x.reshape(R, PACKED_IN)
    # Block-diagonal embedding of the (3, 4) weight; 48 KiB, resident across the grid.
    w_packed = jnp.kron(jnp.eye(GROUP, dtype=weight.dtype), weight.T)       # (96, 128)
    b_packed = jnp.tile(bias, GROUP).reshape(1, PACKED_OUT)                 # (1, 128)

    out_packed = pl.pallas_call(
        linear_kernel,
        out_shape=jax.ShapeDtypeStruct((R, PACKED_OUT), jnp.float32),
        grid=(pl.cdiv(R, tile_r),),
        in_specs=[
            pl.BlockSpec((PACKED_IN, PACKED_OUT), lambda i: (0, 0)),   # weight, fetched once
            pl.BlockSpec((1, PACKED_OUT), lambda i: (0, 0)),           # bias, fetched once
            pl.BlockSpec((tile_r, PACKED_IN), lambda i: (i, 0)),       # activations tile
        ],
        out_specs=pl.BlockSpec((tile_r, PACKED_OUT), lambda i: (i, 0)),
        compiler_params=pltpu.CompilerParams(
            dimension_semantics=("parallel",)),                        # v7x: shard over 2 TCs
        cost_estimate=pl.CostEstimate(
            flops=2 * B * IN_FEATURES * OUT_FEATURES,
            bytes_accessed=B * (IN_FEATURES + OUT_FEATURES) * 4,
            transcendentals=0),
    )(w_packed, b_packed, x_packed)

    return out_packed.reshape(B, OUT_FEATURES)                         # free reshape


def init_params(key):
    # Deterministic init mimicking nn.Linear default: U(-1/sqrt(in), 1/sqrt(in)).
    kw, kb = jax.random.split(key)
    bound = 1.0 / jnp.sqrt(float(IN_FEATURES))
    weight = jax.random.uniform(
        kw, (OUT_FEATURES, IN_FEATURES), jnp.float32, -bound, bound)
    bias = jax.random.uniform(kb, (OUT_FEATURES,), jnp.float32, -bound, bound)
    return weight, bias


if __name__ == "__main__":
    key = jax.random.PRNGKey(0)
    kx, kp = jax.random.split(key)
    weight, bias = init_params(kp)

    def ref_fn(x):
        return x @ weight.T + bias

    fwd = jax.jit(functools.partial(testnet_forward, weight=weight, bias=bias))
    fwd_small_tile = jax.jit(functools.partial(
        testnet_forward, weight=weight, bias=bias, block_rows=64))

    # 1) Kernel path, single grid step (R = 256 packed rows).
    B1 = 8192
    x1 = jax.random.normal(kx, (B1, IN_FEATURES), dtype=jnp.float32)
    out1 = jax.block_until_ready(fwd(x1))
    assert out1.shape == (B1, OUT_FEATURES)
    assert jnp.allclose(out1, ref_fn(x1), atol=1e-5, rtol=1e-5)

    # 2) Kernel path with a multi-step grid and a partial last block
    #    (B = 9472 -> R = 296 packed rows, tile_r = 64 -> 5 steps, last has 40 rows).
    B2 = 9472
    x2 = jax.random.normal(jax.random.fold_in(kx, 1), (B2, IN_FEATURES),
                           dtype=jnp.float32)
    out2 = jax.block_until_ready(fwd_small_tile(x2))
    assert out2.shape == (B2, OUT_FEATURES)
    assert jnp.allclose(out2, ref_fn(x2), atol=1e-5, rtol=1e-5)

    # 3) Tiny batch (matches the nn.Module demo scale): fused XLA fast path.
    B3 = 8
    x3 = jax.random.normal(jax.random.fold_in(kx, 2), (B3, IN_FEATURES),
                           dtype=jnp.float32)
    out3 = jax.block_until_ready(fwd(x3))
    assert out3.shape == (B3, OUT_FEATURES)
    assert jnp.allclose(out3, ref_fn(x3), atol=1e-5, rtol=1e-5)

    print("KERNEL_OK")
</pallas_src>

<mosaic_0001>
module attributes {stable_mosaic.version = 11 : i64} {
  func.func @linear_kernel(%arg0: i32, %arg1: memref<96x128xf32, #tpu.memory_space<vmem>>, %arg2: memref<1x128xf32, #tpu.memory_space<vmem>>, %arg3: memref<256x96xf32, #tpu.memory_space<vmem>>, %arg4: memref<256x128xf32, #tpu.memory_space<vmem>>) attributes {dimension_semantics = [#tpu.dimension_semantics<parallel>], iteration_bounds = array<i64: 1>, scalar_prefetch = 0 : i64, scratch_operands = 0 : i64, tpu.core_type = #tpu.core_type<tc>, window_params = [{pipeline_mode = #tpu.pipeline_mode<synchronous>, transform_indices = @transform_0, window_bounds = array<i64: 96, 128>}, {pipeline_mode = #tpu.pipeline_mode<synchronous>, transform_indices = @transform_1, window_bounds = array<i64: 1, 128>}, {transform_indices = @transform_2, window_bounds = array<i64: 256, 96>}, {transform_indices = @transform_3, window_bounds = array<i64: 256, 128>}]} {
    %c0 = arith.constant 0 : index
    %c0_0 = arith.constant 0 : index
    %0 = vector.load %arg3[%c0, %c0_0] : memref<256x96xf32, #tpu.memory_space<vmem>>, vector<256x96xf32>
    %c0_1 = arith.constant 0 : index
    %c0_2 = arith.constant 0 : index
    %1 = vector.load %arg1[%c0_1, %c0_2] : memref<96x128xf32, #tpu.memory_space<vmem>>, vector<96x128xf32>
    %cst = arith.constant dense<0.000000e+00> : vector<256x128xf32>
    %2 = tpu.matmul %0, %1, %cst {dimension_numbers = #tpu.dot_dimension_numbers<[1], [0], [0], [1], [0, 0, 1, 1], [], []>} : vector<256x96xf32>, vector<96x128xf32>, vector<256x128xf32> -> vector<256x128xf32>
    %c0_3 = arith.constant 0 : index
    %c0_4 = arith.constant 0 : index
    %3 = vector.load %arg2[%c0_3, %c0_4] : memref<1x128xf32, #tpu.memory_space<vmem>>, vector<1x128xf32>
    %4 = vector.broadcast %3 : vector<1x128xf32> to vector<256x128xf32>
    %5 = arith.addf %2, %4 : vector<256x128xf32>
    %c0_5 = arith.constant 0 : index
    %c0_6 = arith.constant 0 : index
    %6 = vector.load %arg4[%c0_5, %c0_6] : memref<256x128xf32, #tpu.memory_space<vmem>>, vector<256x128xf32>
    tpu.vector_store %arg4[%c0_5, %c0_6], %5 {strides = array<i32>} : memref<256x128xf32, #tpu.memory_space<vmem>>, vector<256x128xf32>,
    return
  }
  func.func @transform_0(%arg0: i32) -> (i32, i32) {
    %c0_i32 = arith.constant 0 : i32
    %c0_i32_0 = arith.constant 0 : i32
    %c0_i32_1 = arith.constant 0 : i32
    return %c0_i32, %c0_i32_0 : i32, i32
  }
  func.func @transform_1(%arg0: i32) -> (i32, i32) {
    %c0_i32 = arith.constant 0 : i32
    %c0_i32_0 = arith.constant 0 : i32
    %c0_i32_1 = arith.constant 0 : i32
    return %c0_i32, %c0_i32_0 : i32, i32
  }
  func.func @transform_2(%arg0: i32) -> (i32, i32) {
    %c0_i32 = arith.constant 0 : i32
    %c0_i32_0 = arith.constant 0 : i32
    return %arg0, %c0_i32 : i32, i32
  }
  func.func @transform_3(%arg0: i32) -> (i32, i32) {
    %c0_i32 = arith.constant 0 : i32
    %c0_i32_0 = arith.constant 0 : i32
    return %arg0, %c0_i32 : i32, i32
  }
}

</mosaic_0001>

<llo_original>
// kernel: tile.6
$region0: #{tile.6}
  #allocation0 [shape = 's32[1]{0}', space=sflag, size = 0x4, scoped, tag = 'scoped memory for tile.6']
  %s0 = inlined_call_operand.vmem [shape: f32[4], index: 0, kind: input, shape index: {}]
  %s1 = inlined_call_operand.vmem [shape: f32[32,4], index: 1, kind: output, shape index: {}]
  // Predicated region
  $region2: #{tile.6} parent=0 // pred_check
    _
  $region3: #{tile.6} parent=0 // pred_check_branch
    %3 = sbr.rel (0) target = $region5
  $region4: #{tile.6} parent=0 // pred_region
    _
  $region5: #{tile.6} parent=0 // pred_fallthru
    _
  %v4 = vld [vmem:[%s0] ss:$0 sm:$0xff]
  %5 = vst [vmem:[%s1] sm:$0xff] %v4
  %s6 = scalar_lea.vmem %s1, 8
  %7 = vst [vmem:[%s6] sm:$0xff] %v4
  %s8 = scalar_lea.vmem %s1, 16
  %9 = vst [vmem:[%s8] sm:$0xff] %v4
  %s10 = scalar_lea.vmem %s1, 24
  %11 = vst [vmem:[%s10] sm:$0xff] %v4

// kernel: tile.7
$region0: #{tile.7}
  %s0 = inlined_call_operand.vmem [shape: f32[32,4], index: 0, kind: input, shape index: {}]
  %s1 = inlined_call_operand.vmem [shape: f32[1,128], index: 1, kind: output, shape index: {}]
  $region1: #{tile.7} parent=0
    #allocation0 [shape = 'u8[4096]{0}', space=vmem, size = 0x1000, scoped, tag = 'scoped mem for output reshape']
    %v2 = vld [vmem:[%s0] sm:$0x1]
    %vm3 = vcmask 31744
    %4 = vst.msk [vmem:[#allocation0] sm:$0x1] %vm3, %v2
    %s5 = scalar_lea.vmem %s0, 31
    %v6 = vld [vmem:[%s5] sm:$0x1]
    %7 = vrot.lane.b32.xlu0 %v6, 124
    %v8 = vpop.permute.xlu0 %7
    %vm9 = vcmask 1048544
    %10 = vst.msk [vmem:[#allocation0] sm:$0x1] %vm9, %v8
    %s11 = scalar_lea.vmem %s0, 30
    %v12 = vld [vmem:[%s11] sm:$0x1]
    %13 = vrot.lane.b32.xlu0 %v12, 120
    %v14 = vpop.permute.xlu0 %13
    %vm15 = vcmask 1015744
    %16 = vst.msk [vmem:[#allocation0] sm:$0x1] %vm15, %v14
    %s17 = scalar_lea.vmem %s0, 29
    %v18 = vld [vmem:[%s17] sm:$0x1]
    %19 = vrot.lane.b32.xlu0 %v18, 116
    %v20 = vpop.permute.xlu0 %19
    %vm21 = vcmask 982944
    %22 = vst.msk [vmem:[#allocation0] sm:$0x1] %vm21, %v20
    %s23 = scalar_lea.vmem %s0, 28
    %v24 = vld [vmem:[%s23] sm:$0x1]
    %25 = vrot.lane.b32.xlu0 %v24, 112
    %v26 = vpop.permute.xlu0 %25
    %vm27 = vcmask 950144
    %28 = vst.msk [vmem:[#allocation0] sm:$0x1] %vm27, %v26
    %s29 = scalar_lea.vmem %s0, 27
    %v30 = vld [vmem:[%s29] sm:$0x1]
    %31 = vrot.lane.b32.xlu0 %v30, 108
    %v32 = vpop.permute.xlu0 %31
    %vm33 = vcmask 917344
    %34 = vst.msk [vmem:[#allocation0] sm:$0x1] %vm33, %v32
    %s35 = scalar_lea.vmem %s0, 26
    %v36 = vld [vmem:[%s35] sm:$0x1]
    %37 = vrot.lane.b32.xlu0 %v36, 104
    %v38 = vpop.permute.xlu0 %37
    %vm39 = vcmask 884544
    %40 = vst.msk [vmem:[#allocation0] sm:$0x1] %vm39, %v38
    %s41 = scalar_lea.vmem %s0, 25
    %v42 = vld [vmem:[%s41] sm:$0x1]
    %43 = vrot.lane.b32.xlu0 %v42, 100
    %v44 = vpop.permute.xlu0 %43
    %vm45 = vcmask 851744
    %46 = vst.msk [vmem:[#allocation0] sm:$0x1] %vm45, %v44
    %s47 = scalar_lea.vmem %s0, 24
    %v48 = vld [vmem:[%s47] sm:$0x1]
    %49 = vrot.lane.b32.xlu0 %v48, 96
    %v50 = vpop.permute.xlu0 %49
    %vm51 = vcmask 818944
    %52 = vst.msk [vmem:[#allocation0] sm:$0x1] %vm51, %v50
    %s53 = scalar_lea.vmem %s0, 23
    %v54 = vld [vmem:[%s53] sm:$0x1]
    %55 = vrot.lane.b32.xlu0 %v54, 92
    %v56 = vpop.permute.xlu0 %55
    %vm57 = vcmask 786144
    %58 = vst.msk [vmem:[#allocation0] sm:$0x1] %vm57, %v56
    %s59 = scalar_lea.vmem %s0, 22
    %v60 = vld [vmem:[%s59] sm:$0x1]
    %61 = vrot.lane.b32.xlu0 %v60, 88
    %v62 = vpop.permute.xlu0 %61
    %vm63 = vcmask 753344
    %64 = vst.msk [vmem:[#allocation0] sm:$0x1] %vm63, %v62
    %s65 = scalar_lea.vmem %s0, 21
    %v66 = vld [vmem:[%s65] sm:$0x1]
    %67 = vrot.lane.b32.xlu0 %v66, 84
    %v68 = vpop.permute.xlu0 %67
    %vm69 = vcmask 720544
    %70 = vst.msk [vmem:[#allocation0] sm:$0x1] %vm69, %v68
    %s71 = scalar_lea.vmem %s0, 20
    %v72 = vld [vmem:[%s71] sm:$0x1]
    %73 = vrot.lane.b32.xlu0 %v72, 80
    %v74 = vpop.permute.xlu0 %73
    %vm75 = vcmask 687744
    %76 = vst.msk [vmem:[#allocation0] sm:$0x1] %vm75, %v74
    %s77 = scalar_lea.vmem %s0, 19
    %v78 = vld [vmem:[%s77] sm:$0x1]
    %79 = vrot.lane.b32.xlu0 %v78, 76
    %v80 = vpop.permute.xlu0 %79
    %vm81 = vcmask 654944
    %82 = vst.msk [vmem:[#allocation0] sm:$0x1] %vm81, %v80
    %s83 = scalar_lea.vmem %s0, 18
    %v84 = vld [vmem:[%s83] sm:$0x1]
    %85 = vrot.lane.b32.xlu0 %v84, 72
    %v86 = vpop.permute.xlu0 %85
    %vm87 = vcmask 622144
    %88 = vst.msk [vmem:[#allocation0] sm:$0x1] %vm87, %v86
    %s89 = scalar_lea.vmem %s0, 17
    %v90 = vld [vmem:[%s89] sm:$0x1]
    %91 = vrot.lane.b32.xlu0 %v90, 68
    %v92 = vpop.permute.xlu0 %91
    %vm93 = vcmask 589344
    %94 = vst.msk [vmem:[#allocation0] sm:$0x1] %vm93, %v92
    %s95 = scalar_lea.vmem %s0, 16
    %v96 = vld [vmem:[%s95] sm:$0x1]
    %97 = vrot.lane.b32.xlu0 %v96, 64
    %v98 = vpop.permute.xlu0 %97
    %vm99 = vcmask 556544
    %100 = vst.msk [vmem:[#allocation0] sm:$0x1] %vm99, %v98
    %s101 = scalar_lea.vmem %s0, 15
    %v102 = vld [vmem:[%s101] sm:$0x1]
    %103 = vrot.lane.b32.xlu0 %v102, 60
    %v104 = vpop.permute.xlu0 %103
    %vm105 = vcmask 523744
    %106 = vst.msk [vmem:[#allocation0] sm:$0x1] %vm105, %v104
    %s107 = scalar_lea.vmem %s0, 14
    %v108 = vld [vmem:[%s107] sm:$0x1]
    %109 = vrot.lane.b32.xlu0 %v108, 56
    %v110 = vpop.permute.xlu0 %109
    %vm111 = vcmask 490944
    %112 = vst.msk [vmem:[#allocation0] sm:$0x1] %vm111, %v110
    %s113 = scalar_lea.vmem %s0, 13
    %v114 = vld [vmem:[%s113] sm:$0x1]
    %115 = vrot.lane.b32.xlu0 %v114, 52
    %v116 = vpop.permute.xlu0 %115
    %vm117 = vcmask 458144
    %118 = vst.msk [vmem:[#allocation0] sm:$0x1] %vm117, %v116
    %s119 = scalar_lea.vmem %s0, 12
    %v120 = vld [vmem:[%s119] sm:$0x1]
    %121 = vrot.lane.b32.xlu0 %v120, 48
    %v122 = vpop.permute.xlu0 %121
    %vm123 = vcmask 425344
    %124 = vst.msk [vmem:[#allocation0] sm:$0x1] %vm123, %v122
    %s125 = scalar_lea.vmem %s0, 11
    %v126 = vld [vmem:[%s125] sm:$0x1]
    %127 = vrot.lane.b32.xlu0 %v126, 44
    %v128 = vpop.permute.xlu0 %127
    %vm129 = vcmask 392544
    %130 = vst.msk [vmem:[#allocation0] sm:$0x1] %vm129, %v128
    %s131 = scalar_lea.vmem %s0, 10
    %v132 = vld [vmem:[%s131] sm:$0x1]
    %133 = vrot.lane.b32.xlu0 %v132, 40
    %v134 = vpop.permute.xlu0 %133
    %vm135 = vcmask 359744
    %136 = vst.msk [vmem:[#allocation0] sm:$0x1] %vm135, %v134
    %s137 = scalar_lea.vmem %s0, 9
    %v138 = vld [vmem:[%s137] sm:$0x1]
    %139 = vrot.lane.b32.xlu0 %v138, 36
    %v140 = vpop.permute.xlu0 %139
    %vm141 = vcmask 326944
    %142 = vst.msk [vmem:[#allocation0] sm:$0x1] %vm141, %v140
    %s143 = scalar_lea.vmem %s0, 8
    %v144 = vld [vmem:[%s143] sm:$0x1]
    %145 = vrot.lane.b32.xlu0 %v144, 32
    %v146 = vpop.permute.xlu0 %145
    %vm147 = vcmask 294144
    %148 = vst.msk [vmem:[#allocation0] sm:$0x1] %vm147, %v146
    %s149 = scalar_lea.vmem %s0, 7
    %v150 = vld [vmem:[%s149] sm:$0x1]
    %151 = vrot.lane.b32.xlu0 %v150, 28
    %v152 = vpop.permute.xlu0 %151
    %vm153 = vcmask 261344
    %154 = vst.msk [vmem:[#allocation0] sm:$0x1] %vm153, %v152
    %s155 = scalar_lea.vmem %s0, 6
    %v156 = vld [vmem:[%s155] sm:$0x1]
    %157 = vrot.lane.b32.xlu0 %v156, 24
    %v158 = vpop.permute.xlu0 %157
    %vm159 = vcmask 228544
    %160 = vst.msk [vmem:[#allocation0] sm:$0x1] %vm159, %v158
    %s161 = scalar_lea.vmem %s0, 5
    %v162 = vld [vmem:[%s161] sm:$0x1]
    %163 = vrot.lane.b32.xlu0 %v162, 20
    %v164 = vpop.permute.xlu0 %163
    %vm165 = vcmask 195744
    %166 = vst.msk [vmem:[#allocation0] sm:$0x1] %vm165, %v164
    %s167 = scalar_lea.vmem %s0, 4
    %v168 = vld [vmem:[%s167] sm:$0x1]
    %169 = vrot.lane.b32.xlu0 %v168, 16
    %v170 = vpop.permute.xlu0 %169
    %vm171 = vcmask 162944
    %172 = vst.msk [vmem:[#allocation0] sm:$0x1] %vm171, %v170
    %s173 = scalar_lea.vmem %s0, 3
    %v174 = vld [vmem:[%s173] sm:$0x1]
    %175 = vrot.lane.b32.xlu0 %v174, 12
    %v176 = vpop.permute.xlu0 %175
    %vm177 = vcmask 130144
    %178 = vst.msk [vmem:[#allocation0] sm:$0x1] %vm177, %v176
    %s179 = scalar_lea.vmem %s0, 2
    %v180 = vld [vmem:[%s179] sm:$0x1]
    %181 = vrot.lane.b32.xlu0 %v180, 8
    %v182 = vpop.permute.xlu0 %181
    %vm183 = vcmask 97344
    %184 = vst.msk [vmem:[#allocation0] sm:$0x1] %vm183, %v182
    %s185 = scalar_lea.vmem %s0, 1
    %v186 = vld [vmem:[%s185] sm:$0x1]
    %187 = vrot.lane.b32.xlu0 %v186, 4
    %v188 = vpop.permute.xlu0 %187
    %vm189 = vcmask 64544
    %190 = vst.msk [vmem:[#allocation0] sm:$0x1] %vm189, %v188
    %s192 = sshllo.u32 0, 1
    %v194 = vld [vmem:[#allocation0] sm:%s192]
    %s195 = sshllo.u32 0, 1
    %196 = vst [vmem:[%s1] sm:%s195] %v194

// kernel: testnet_forward.1
$region0: #{testnet_forward.1}
  #allocation0 [shape = 'u32[]', space=smem, size = 0x4, offset = 0x4, fixed_abs, tag = 'smem constant byte address 0x4 - core index']
  #allocation1 [shape = 'u32[144,128]{1,0:T(1,128)}', space=vmem, size = 0x12000, scoped, tag = 'internal scratch']
  %s0 = inlined_call_operand.vmem [shape: f32[96,128], index: 0, kind: input, shape index: {}]
  %s1 = inlined_call_operand.vmem [shape: f32[1,128], index: 1, kind: input, shape index: {}]
  %s2 = inlined_call_operand.vmem [shape: f32[256,96], index: 2, kind: input, shape index: {}]
  %s3 = inlined_call_operand.vmem [shape: f32[256,128], index: 3, kind: output, shape index: {}]
  %s4 = sld [smem:[#allocation0]]
  $region22: #{testnet_forward.1} parent=0
    _
  %s6 = ssub.s32 1, %s4
  %s7 = scalar_select 0, %s6, %s4
  // Predicated region
  $region2: #{testnet_forward.1} parent=0 // pred_check
    _
  $region3: #{testnet_forward.1} parent=0 // pred_check_branch
    %9 = sbr.rel (0) target = $region5
  $region4: #{testnet_forward.1} parent=0 // pred_region
    _
  $region5: #{testnet_forward.1} parent=0 // pred_fallthru
    _
  // Predicated region
  $region6: #{testnet_forward.1} parent=0 // pred_check
    _
  $region7: #{testnet_forward.1} parent=0 // pred_check_branch
    %11 = sbr.rel (0) target = $region9
  $region8: #{testnet_forward.1} parent=0 // pred_region
    _
  $region9: #{testnet_forward.1} parent=0 // pred_fallthru
    _
  // Predicated region
  $region10: #{testnet_forward.1} parent=0 // pred_check
    _
  $region11: #{testnet_forward.1} parent=0 // pred_check_branch
    %13 = sbr.rel (0) target = $region13
  $region12: #{testnet_forward.1} parent=0 // pred_region
    _
  $region13: #{testnet_forward.1} parent=0 // pred_fallthru
    _
  %v14 = vld [vmem:[%s2] sm:$0xff]
  %v15 = vld [vmem:[%s2 + $0x8] sm:$0xff]
  %v16 = vld [vmem:[%s2 + $0x10] sm:$0xff]
  %v17 = vld [vmem:[%s2 + $0x18] sm:$0xff]
  %v18 = vld [vmem:[%s2 + $0x20] sm:$0xff]
  %v19 = vld [vmem:[%s2 + $0x28] sm:$0xff]
  %v20 = vld [vmem:[%s2 + $0x30] sm:$0xff]
  %v21 = vld [vmem:[%s2 + $0x38] sm:$0xff]
  %v22 = vld [vmem:[%s2 + $0x40] sm:$0xff]
  %v23 = vld [vmem:[%s2 + $0x48] sm:$0xff]
  %v24 = vld [vmem:[%s2 + $0x50] sm:$0xff]
  %v25 = vld [vmem:[%s2 + $0x58] sm:$0xff]
  %v26 = vld [vmem:[%s2 + $0x60] sm:$0xff]
  %v27 = vld [vmem:[%s2 + $0x68] sm:$0xff]
  %v28 = vld [vmem:[%s2 + $0x70] sm:$0xff]
  %v29 = vld [vmem:[%s2 + $0x78] sm:$0xff]
  %v30 = vld [vmem:[%s2 + $0x80] sm:$0xff]
  %v31 = vld [vmem:[%s2 + $0x88] sm:$0xff]
  %v32 = vld [vmem:[%s2 + $0x90] sm:$0xff]
  %v33 = vld [vmem:[%s2 + $0x98] sm:$0xff]
  %v34 = vld [vmem:[%s2 + $0xa0] sm:$0xff]
  %v35 = vld [vmem:[%s2 + $0xa8] sm:$0xff]
  %v36 = vld [vmem:[%s2 + $0xb0] sm:$0xff]
  %v37 = vld [vmem:[%s2 + $0xb8] sm:$0xff]
  %v38 = vld [vmem:[%s2 + $0xc0] sm:$0xff]
  %v39 = vld [vmem:[%s2 + $0xc8] sm:$0xff]
  %v40 = vld [vmem:[%s2 + $0xd0] sm:$0xff]
  %v41 = vld [vmem:[%s2 + $0xd8] sm:$0xff]
  %v42 = vld [vmem:[%s2 + $0xe0] sm:$0xff]
  %v43 = vld [vmem:[%s2 + $0xe8] sm:$0xff]
  %v44 = vld [vmem:[%s2 + $0xf0] sm:$0xff]
  %v45 = vld [vmem:[%s2 + $0xf8] sm:$0xff]
  %v46 = vld [vmem:[%s0] sm:$0xff]
  %v47 = vld [vmem:[%s0 + $0x8] sm:$0xff]
  %v48 = vld [vmem:[%s0 + $0x10] sm:$0xff]
  %v49 = vld [vmem:[%s0 + $0x18] sm:$0xff]
  %v50 = vld [vmem:[%s0 + $0x20] sm:$0xff]
  %v51 = vld [vmem:[%s0 + $0x28] sm:$0xff]
  %v52 = vld [vmem:[%s0 + $0x30] sm:$0xff]
  %v53 = vld [vmem:[%s0 + $0x38] sm:$0xff]
  %v54 = vld [vmem:[%s0 + $0x40] sm:$0xff]
  %v55 = vld [vmem:[%s0 + $0x48] sm:$0xff]
  %v56 = vld [vmem:[%s0 + $0x50] sm:$0xff]
  %v57 = vld [vmem:[%s0 + $0x58] sm:$0xff]
  %v58 = vld [vmem:[%s1] sm:$0x1]
  %v60 = vlaneseq
  %v61 = vshrl.u32 %v60, 7
  %v62 = vsub.s32 0, %v61
  %v63 = vrot.slane %v58, %v62
  %vm65 = vcmask 785408
  %v67 = vsel %vm65, %v14, 0
  %v70 = vsel %vm65, %v15, 0
  %v73 = vsel %vm65, %v16, 0
  %v76 = vsel %vm65, %v17, 0
  %v79 = vsel %vm65, %v18, 0
  %v82 = vsel %vm65, %v19, 0
  %v85 = vsel %vm65, %v20, 0
  %v88 = vsel %vm65, %v21, 0
  %v91 = vsel %vm65, %v22, 0
  %v94 = vsel %vm65, %v23, 0
  %v97 = vsel %vm65, %v24, 0
  %v100 = vsel %vm65, %v25, 0
  %v103 = vsel %vm65, %v26, 0
  %v106 = vsel %vm65, %v27, 0
  %v109 = vsel %vm65, %v28, 0
  %v112 = vsel %vm65, %v29, 0
  %v115 = vsel %vm65, %v30, 0
  %v118 = vsel %vm65, %v31, 0
  %v121 = vsel %vm65, %v32, 0
  %v124 = vsel %vm65, %v33, 0
  %v127 = vsel %vm65, %v34, 0
  %v130 = vsel %vm65, %v35, 0
  %v133 = vsel %vm65, %v36, 0
  %v136 = vsel %vm65, %v37, 0
  %v139 = vsel %vm65, %v38, 0
  %v142 = vsel %vm65, %v39, 0
  %v145 = vsel %vm65, %v40, 0
  %v148 = vsel %vm65, %v41, 0
  %v151 = vsel %vm65, %v42, 0
  %v154 = vsel %vm65, %v43, 0
  %v157 = vsel %vm65, %v44, 0
  %v160 = vsel %vm65, %v45, 0
  %162 = vmatprep.subr.mxu0 0.0
  %163 = vmatpush1.msra.mxu0 %v46
  %164 = vmatprep.subr.mxu0 0.0
  %165 = vmatpush1.msra.mxu0 %v47
  %166 = vmatprep.subr.mxu0 0.0
  %167 = vmatpush1.msra.mxu0 %v48
  %168 = vmatprep.subr.mxu0 0.0
  %169 = vmatpush1.msra.mxu0 %v49
  %170 = vmatprep.subr.mxu0 0.0
  %171 = vmatpush1.msra.mxu0 %v50
  %172 = vmatprep.subr.mxu0 0.0
  %173 = vmatpush1.msra.mxu0 %v51
  %174 = vmatprep.subr.mxu0 0.0
  %175 = vmatpush1.msra.mxu0 %v52
  %176 = vmatprep.subr.mxu0 0.0
  %177 = vmatpush1.msra.mxu0 %v53
  %178 = vmatprep.subr.mxu0 0.0
  %179 = vmatpush1.msra.mxu0 %v54
  %180 = vmatprep.subr.mxu0 0.0
  %181 = vmatpush1.msra.mxu0 %v55
  %182 = vmatprep.subr.mxu0 0.0
  %183 = vmatpush1.msra.mxu0 %v56
  %184 = vmatprep.subr.mxu0 0.0
  %185 = vmatpush1.msra.mxu0 %v57
  %186 = vmatprep.subr.mxu0 0.0
  %187 = vmatpush1.msra.mxu0 0.0
  %188 = vmatprep.subr.mxu0 0.0
  %189 = vmatpush1.msra.mxu0 0.0
  %190 = vmatprep.subr.mxu0 0.0
  %191 = vmatpush1.msra.mxu0 0.0
  %192 = vmatprep.subr.mxu0 0.0
  %193 = vmatpush1.msra.mxu0 0.0
  %194 = vmatprep.subr.mxu0 0.0
  %195 = vmatpush1.msra.mxu0 0.0
  %196 = vmatprep.subr.mxu0 0.0
  %197 = vmatpush1.msra.mxu0 0.0
  %198 = vmatprep.subr.mxu0 0.0
  %199 = vmatpush1.msra.mxu0 0.0
  %200 = vmatprep.subr.mxu0 0.0
  %201 = vmatpush1.msra.mxu0 0.0
  %202 = vmatprep.subr.mxu0 0.0
  %203 = vmatpush1.msra.mxu0 0.0
  %204 = vmatprep.subr.mxu0 0.0
  %205 = vmatpush1.msra.mxu0 0.0
  %206 = vmatprep.subr.mxu0 0.0
  %207 = vmatpush1.msra.mxu0 0.0
  %208 = vmatprep.subr.mxu0 0.0
  %209 = vmatpush1.msra.mxu0 0.0
  %210 = vmatprep.subr.mxu0 0.0
  %211 = vmatpush1.msra.mxu0 0.0
  %212 = vmatprep.subr.mxu0 0.0
  %213 = vmatpush1.msra.mxu0 0.0
  %214 = vmatprep.subr.mxu0 0.0
  %215 = vmatpush1.msra.mxu0 0.0
  %216 = vmatprep.subr.mxu0 0.0
  %217 = vmatpush1.msra.mxu0 0.0
  %218 = vmatprep.subr.mxu0 0.0
  %219 = vmatpush1.msra.mxu0 0.0
  %220 = vmatprep.subr.mxu0 0.0
  %221 = vmatpush1.msra.mxu0 0.0
  %222 = vmatprep.subr.mxu0 0.0
  %223 = vmatpush1.msra.mxu0 0.0
  %224 = vmatprep.subr.mxu0 0.0
  %225 = vmatpush1.msra.mxu0 0.0
  %226 = vmatprep.mubr.f32.mxu0 0.0
  %227 = vmatmul.mubr.f32.gmra.mrb[0].mxu0 %v67
  %v228 = vpop.f32.mrb[0].mxu0
  %v229 = vadd.f32 %v63, %v228
  %v230 = vpop.f32.mrb[0].mxu0
  %231 = vmatprep.mubr.f32.mxu0 0.0
  %232 = vmatmul.mubr.f32.gmra.mrb[0].mxu0 %v70
  %v233 = vpop.f32.mrb[0].mxu0
  %v234 = vadd.f32 %v63, %v233
  %v235 = vpop.f32.mrb[0].mxu0
  %236 = vmatprep.mubr.f32.mxu0 0.0
  %237 = vmatmul.mubr.f32.gmra.mrb[0].mxu0 %v73
  %v238 = vpop.f32.mrb[0].mxu0
  %v239 = vadd.f32 %v63, %v238
  %v240 = vpop.f32.mrb[0].mxu0
  %241 = vmatprep.mubr.f32.mxu0 0.0
  %242 = vmatmul.mubr.f32.gmra.mrb[0].mxu0 %v76
  %v243 = vpop.f32.mrb[0].mxu0
  %v244 = vadd.f32 %v63, %v243
  %v245 = vpop.f32.mrb[0].mxu0
  %246 = vmatprep.mubr.f32.mxu0 0.0
  %247 = vmatmul.mubr.f32.gmra.mrb[0].mxu0 %v79
  %v248 = vpop.f32.mrb[0].mxu0
  %v249 = vadd.f32 %v63, %v248
  %v250 = vpop.f32.mrb[0].mxu0
  %251 = vmatprep.mubr.f32.mxu0 0.0
  %252 = vmatmul.mubr.f32.gmra.mrb[0].mxu0 %v82
  %v253 = vpop.f32.mrb[0].mxu0
  %v254 = vadd.f32 %v63, %v253
  %v255 = vpop.f32.mrb[0].mxu0
  %256 = vmatprep.mubr.f32.mxu0 0.0
  %257 = vmatmul.mubr.f32.gmra.mrb[0].mxu0 %v85
  %v258 = vpop.f32.mrb[0].mxu0
  %v259 = vadd.f32 %v63, %v258
  %v260 = vpop.f32.mrb[0].mxu0
  %261 = vmatprep.mubr.f32.mxu0 0.0
  %262 = vmatmul.mubr.f32.gmra.mrb[0].mxu0 %v88
  %v263 = vpop.f32.mrb[0].mxu0
  %v264 = vadd.f32 %v63, %v263
  %v265 = vpop.f32.mrb[0].mxu0
  %266 = vmatprep.mubr.f32.mxu0 0.0
  %267 = vmatmul.mubr.f32.gmra.mrb[0].mxu0 %v91
  %v268 = vpop.f32.mrb[0].mxu0
  %v269 = vadd.f32 %v63, %v268
  %v270 = vpop.f32.mrb[0].mxu0
  %271 = vmatprep.mubr.f32.mxu0 0.0
  %272 = vmatmul.mubr.f32.gmra.mrb[0].mxu0 %v94
  %v273 = vpop.f32.mrb[0].mxu0
  %v274 = vadd.f32 %v63, %v273
  %v275 = vpop.f32.mrb[0].mxu0
  %276 = vmatprep.mubr.f32.mxu0 0.0
  %277 = vmatmul.mubr.f32.gmra.mrb[0].mxu0 %v97
  %v278 = vpop.f32.mrb[0].mxu0
  %v279 = vadd.f32 %v63, %v278
  %v280 = vpop.f32.mrb[0].mxu0
  %281 = vmatprep.mubr.f32.mxu0 0.0
  %282 = vmatmul.mubr.f32.gmra.mrb[0].mxu0 %v100
  %v283 = vpop.f32.mrb[0].mxu0
  %v284 = vadd.f32 %v63, %v283
  %v285 = vpop.f32.mrb[0].mxu0
  %286 = vmatprep.mubr.f32.mxu0 0.0
  %287 = vmatmul.mubr.f32.gmra.mrb[0].mxu0 %v103
  %v288 = vpop.f32.mrb[0].mxu0
  %v289 = vadd.f32 %v63, %v288
  %v290 = vpop.f32.mrb[0].mxu0
  %291 = vmatprep.mubr.f32.mxu0 0.0
  %292 = vmatmul.mubr.f32.gmra.mrb[0].mxu0 %v106
  %v293 = vpop.f32.mrb[0].mxu0
  %v294 = vadd.f32 %v63, %v293
  %v295 = vpop.f32.mrb[0].mxu0
  %296 = vmatprep.mubr.f32.mxu0 0.0
  %297 = vmatmul.mubr.f32.gmra.mrb[0].mxu0 %v109
  %v298 = vpop.f32.mrb[0].mxu0
  %v299 = vadd.f32 %v63, %v298
  %v300 = vpop.f32.mrb[0].mxu0
  %301 = vmatprep.mubr.f32.mxu0 0.0
  %302 = vmatmul.mubr.f32.gmra.mrb[0].mxu0 %v112
  %v303 = vpop.f32.mrb[0].mxu0
  %v304 = vadd.f32 %v63, %v303
  %v305 = vpop.f32.mrb[0].mxu0
  %306 = vmatprep.mubr.f32.mxu0 0.0
  %307 = vmatmul.mubr.f32.gmra.mrb[0].mxu0 %v115
  %v308 = vpop.f32.mrb[0].mxu0
  %v309 = vadd.f32 %v63, %v308
  %v310 = vpop.f32.mrb[0].mxu0
  %311 = vmatprep.mubr.f32.mxu0 0.0
  %312 = vmatmul.mubr.f32.gmra.mrb[0].mxu0 %v118
  %v313 = vpop.f32.mrb[0].mxu0
  %v314 = vadd.f32 %v63, %v313
  %v315 = vpop.f32.mrb[0].mxu0
  %316 = vmatprep.mubr.f32.mxu0 0.0
  %317 = vmatmul.mubr.f32.gmra.mrb[0].mxu0 %v121
  %v318 = vpop.f32.mrb[0].mxu0
  %v319 = vadd.f32 %v63, %v318
  %v320 = vpop.f32.mrb[0].mxu0
  %321 = vmatprep.mubr.f32.mxu0 0.0
  %322 = vmatmul.mubr.f32.gmra.mrb[0].mxu0 %v124
  %v323 = vpop.f32.mrb[0].mxu0
  %v324 = vadd.f32 %v63, %v323
  %v325 = vpop.f32.mrb[0].mxu0
  %326 = vmatprep.mubr.f32.mxu0 0.0
  %327 = vmatmul.mubr.f32.gmra.mrb[0].mxu0 %v127
  %v328 = vpop.f32.mrb[0].mxu0
  %v329 = vadd.f32 %v63, %v328
  %v330 = vpop.f32.mrb[0].mxu0
  %331 = vmatprep.mubr.f32.mxu0 0.0
  %332 = vmatmul.mubr.f32.gmra.mrb[0].mxu0 %v130
  %v333 = vpop.f32.mrb[0].mxu0
  %v334 = vadd.f32 %v63, %v333
  %v335 = vpop.f32.mrb[0].mxu0
  %336 = vmatprep.mubr.f32.mxu0 0.0
  %337 = vmatmul.mubr.f32.gmra.mrb[0].mxu0 %v133
  %v338 = vpop.f32.mrb[0].mxu0
  %v339 = vadd.f32 %v63, %v338
  %v340 = vpop.f32.mrb[0].mxu0
  %341 = vmatprep.mubr.f32.mxu0 0.0
  %342 = vmatmul.mubr.f32.gmra.mrb[0].mxu0 %v136
  %v343 = vpop.f32.mrb[0].mxu0
  %v344 = vadd.f32 %v63, %v343
  %v345 = vpop.f32.mrb[0].mxu0
  %346 = vmatprep.mubr.f32.mxu0 0.0
  %347 = vmatmul.mubr.f32.gmra.mrb[0].mxu0 %v139
  %v348 = vpop.f32.mrb[0].mxu0
  %v349 = vadd.f32 %v63, %v348
  %v350 = vpop.f32.mrb[0].mxu0
  %351 = vmatprep.mubr.f32.mxu0 0.0
  %352 = vmatmul.mubr.f32.gmra.mrb[0].mxu0 %v142
  %v353 = vpop.f32.mrb[0].mxu0
  %v354 = vadd.f32 %v63, %v353
  %v355 = vpop.f32.mrb[0].mxu0
  %356 = vmatprep.mubr.f32.mxu0 0.0
  %357 = vmatmul.mubr.f32.gmra.mrb[0].mxu0 %v145
  %v358 = vpop.f32.mrb[0].mxu0
  %v359 = vadd.f32 %v63, %v358
  %v360 = vpop.f32.mrb[0].mxu0
  %361 = vmatprep.mubr.f32.mxu0 0.0
  %362 = vmatmul.mubr.f32.gmra.mrb[0].mxu0 %v148
  %v363 = vpop.f32.mrb[0].mxu0
  %v364 = vadd.f32 %v63, %v363
  %v365 = vpop.f32.mrb[0].mxu0
  %366 = vmatprep.mubr.f32.mxu0 0.0
  %367 = vmatmul.mubr.f32.gmra.mrb[0].mxu0 %v151
  %v368 = vpop.f32.mrb[0].mxu0
  %v369 = vadd.f32 %v63, %v368
  %v370 = vpop.f32.mrb[0].mxu0
  %371 = vmatprep.mubr.f32.mxu0 0.0
  %372 = vmatmul.mubr.f32.gmra.mrb[0].mxu0 %v154
  %v373 = vpop.f32.mrb[0].mxu0
  %v374 = vadd.f32 %v63, %v373
  %v375 = vpop.f32.mrb[0].mxu0
  %376 = vmatprep.mubr.f32.mxu0 0.0
  %377 = vmatmul.mubr.f32.gmra.mrb[0].mxu0 %v157
  %v378 = vpop.f32.mrb[0].mxu0
  %v379 = vadd.f32 %v63, %v378
  %v380 = vpop.f32.mrb[0].mxu0
  %381 = vmatprep.mubr.f32.mxu0 0.0
  %382 = vmatmul.mubr.f32.gmra.mrb[0].mxu0 %v160
  %v383 = vpop.f32.mrb[0].mxu0
  %v384 = vadd.f32 %v63, %v383
  %v385 = vpop.f32.mrb[0].mxu0
  %386 = vdwg.mxu0
  %387 = vst [vmem:[%s3] sm:$0xff] %v229
  %388 = vst [vmem:[%s3 + $0x8] sm:$0xff] %v234
  %389 = vst [vmem:[%s3 + $0x10] sm:$0xff] %v239
  %390 = vst [vmem:[%s3 + $0x18] sm:$0xff] %v244
  %391 = vst [vmem:[%s3 + $0x20] sm:$0xff] %v249
  %392 = vst [vmem:[%s3 + $0x28] sm:$0xff] %v254
  %393 = vst [vmem:[%s3 + $0x30] sm:$0xff] %v259
  %394 = vst [vmem:[%s3 + $0x38] sm:$0xff] %v264
  %395 = vst [vmem:[%s3 + $0x40] sm:$0xff] %v269
  %396 = vst [vmem:[%s3 + $0x48] sm:$0xff] %v274
  %397 = vst [vmem:[%s3 + $0x50] sm:$0xff] %v279
  %398 = vst [vmem:[%s3 + $0x58] sm:$0xff] %v284
  %399 = vst [vmem:[%s3 + $0x60] sm:$0xff] %v289
  %400 = vst [vmem:[%s3 + $0x68] sm:$0xff] %v294
  %401 = vst [vmem:[%s3 + $0x70] sm:$0xff] %v299
  %402 = vst [vmem:[%s3 + $0x78] sm:$0xff] %v304
  %403 = vst [vmem:[%s3 + $0x80] sm:$0xff] %v309
  %404 = vst [vmem:[%s3 + $0x88] sm:$0xff] %v314
  %405 = vst [vmem:[%s3 + $0x90] sm:$0xff] %v319
  %406 = vst [vmem:[%s3 + $0x98] sm:$0xff] %v324
  %407 = vst [vmem:[%s3 + $0xa0] sm:$0xff] %v329
  %408 = vst [vmem:[%s3 + $0xa8] sm:$0xff] %v334
  %409 = vst [vmem:[%s3 + $0xb0] sm:$0xff] %v339
  %410 = vst [vmem:[%s3 + $0xb8] sm:$0xff] %v344
  %411 = vst [vmem:[%s3 + $0xc0] sm:$0xff] %v349
  %412 = vst [vmem:[%s3 + $0xc8] sm:$0xff] %v354
  %413 = vst [vmem:[%s3 + $0xd0] sm:$0xff] %v359
  %414 = vst [vmem:[%s3 + $0xd8] sm:$0xff] %v364
  %415 = vst [vmem:[%s3 + $0xe0] sm:$0xff] %v369
  %416 = vst [vmem:[%s3 + $0xe8] sm:$0xff] %v374
  %417 = vst [vmem:[%s3 + $0xf0] sm:$0xff] %v379
  %418 = vst [vmem:[%s3 + $0xf8] sm:$0xff] %v384
  // Predicated region
  $region14: #{testnet_forward.1} parent=0 // pred_check
    _
  $region15: #{testnet_forward.1} parent=0 // pred_check_branch
    %420 = sbr.rel (0) target = $region17
  $region16: #{testnet_forward.1} parent=0 // pred_region
    _
  $region17: #{testnet_forward.1} parent=0 // pred_fallthru
    _
  // Predicated region
  $region18: #{testnet_forward.1} parent=0 // pred_check
    _
  $region19: #{testnet_forward.1} parent=0 // pred_check_branch
    %422 = sbr.rel (0) target = $region21
  $region20: #{testnet_forward.1} parent=0 // pred_region
    _
  $region21: #{testnet_forward.1} parent=0 // pred_fallthru
    _

</llo_original>
